<compile_context>
chip_gen: v7x
topology: tpu7x:2x2x1
jax: 0.10.0
libtpu: 0.0.40
codegen_flags: <defaults>
</compile_context>

<pallas_src>
import jax
import jax.numpy as jnp
from jax.experimental import pallas as pl
from jax.experimental.pallas import tpu as pltpu


def _make_huber_kernel(block_rows, lanes, rows, blocks_per_slice,
                       ragged, has_dead_steps):
    """Per-slice partials: out[s] = [max|d| , sum|d| , sum d^2], each (8,lanes)."""
    fold8 = (block_rows % 8 == 0) and (block_rows >= 8)

    def _accum(d, out_ref):
        ad = jnp.abs(d)
        sq = d * d
        if fold8:
            # Fold the block's leading axis into the 8-sublane accumulator:
            # pure VPU max/add of full vregs, unmasked full-vreg stores.
            m = jnp.max(ad.reshape(block_rows // 8, 8, lanes), axis=0)
            s = jnp.sum(ad.reshape(block_rows // 8, 8, lanes), axis=0)
            q = jnp.sum(sq.reshape(block_rows // 8, 8, lanes), axis=0)
            out_ref[0, 0, :, :] = jnp.maximum(out_ref[0, 0, :, :], m)
            out_ref[0, 1, :, :] = out_ref[0, 1, :, :] + s
            out_ref[0, 2, :, :] = out_ref[0, 2, :, :] + q
        else:
            # Tiny single-block case (block_rows < 8 or not a multiple of 8):
            # collapse rows once and accumulate into sublane row 0.
            m = jnp.max(ad, axis=0, keepdims=True)
            s = jnp.sum(ad, axis=0, keepdims=True)
            q = jnp.sum(sq, axis=0, keepdims=True)
            out_ref[0, 0, 0:1, :] = jnp.maximum(out_ref[0, 0, 0:1, :], m)
            out_ref[0, 1, 0:1, :] = out_ref[0, 1, 0:1, :] + s
            out_ref[0, 2, 0:1, :] = out_ref[0, 2, 0:1, :] + q

    def kernel(p_ref, t_ref, out_ref):
        k = pl.program_id(1)

        @pl.when(k == 0)
        def _():
            # max accumulator starts at 0.0 (not -inf): it tracks max(|d|) >= 0.
            out_ref[...] = jnp.zeros_like(out_ref)

        def full_block():
            d = p_ref[...].astype(jnp.float32) - t_ref[...].astype(jnp.float32)
            _accum(d, out_ref)

        if ragged or has_dead_steps:
            # Guards are a single scalar compare per step; the masked path is
            # statically present but runtime-taken at most once per kernel.
            g = pl.program_id(0) * blocks_per_slice + k        # global block id
            valid = rows - g * block_rows                      # rows owned by g

            @pl.when(valid >= block_rows)
            def _():
                full_block()

            if ragged:
                @pl.when(jnp.logical_and(valid > 0, valid < block_rows))
                def _():
                    d = (p_ref[...].astype(jnp.float32)
                         - t_ref[...].astype(jnp.float32))
                    row = jax.lax.broadcasted_iota(jnp.int32, (block_rows, 1), 0)
                    # diff == 0 is neutral for max|d|, sum|d| and sum d^2.
                    _accum(jnp.where(row < valid, d, 0.0), out_ref)
        else:
            full_block()

    return kernel


def loss_huber(pred, truth, *, block_bytes=8 * 1024 * 1024):
    assert pred.shape == truth.shape
    total = 1
    for s in pred.shape:
        total *= int(s)

    # Lane width (multiple of 128) chosen to divide the element count so the
    # common path needs no HBM pad-copy.
    lanes = 512
    while lanes > 128 and total % lanes != 0:
        lanes //= 2

    p_flat = pred.reshape(-1)
    t_flat = truth.reshape(-1)
    padded_total = total
    if total % lanes != 0:
        # TODO(synk): rare ragged-lane fallback still does a jnp.pad HBM copy;
        # could instead reduce the <128-element remainder on the JAX side.
        pad = (-total) % lanes
        p_flat = jnp.pad(p_flat, (0, pad))
        t_flat = jnp.pad(t_flat, (0, pad))
        padded_total = total + pad

    rows = padded_total // lanes
    p2 = p_flat.reshape(rows, lanes)
    t2 = t_flat.reshape(rows, lanes)

    itemsize = jnp.dtype(pred.dtype).itemsize
    # Native sublane tile height for the input dtype: 8 f32 / 16 bf16 / 32 int8.
    sub = max(8, (8 * 4) // itemsize)
    target = max(sub, block_bytes // (lanes * itemsize))
    target -= target % sub

    if rows <= target:
        # Whole input fits in a single block per operand -> single slice.
        n_slices = 1
        block_rows = rows
        blocks_per_slice = 1
        total_blocks = 1
        ragged = False
        has_dead_steps = False
    else:
        n_slices = 2  # megacore split (v7x); harmless serial loop on 1-TC chips
        # Prefer a block_rows that (a) divides rows (no ragged tail to mask)
        # and (b) gives a block count divisible by n_slices (no dead steps),
        # searching downward from the target but never below half of it.
        lo = max(sub, ((target // 2) // sub) * sub)
        block_rows = 0
        fallback = 0
        for br in range(target, lo - 1, -sub):
            if rows % br == 0:
                if (rows // br) % n_slices == 0:
                    block_rows = br
                    break
                if fallback == 0:
                    fallback = br
        if block_rows == 0:
            block_rows = fallback if fallback else target
        total_blocks = pl.cdiv(rows, block_rows)
        blocks_per_slice = pl.cdiv(total_blocks, n_slices)
        ragged = (rows % block_rows) != 0
        has_dead_steps = (n_slices * blocks_per_slice) != total_blocks

    kernel = _make_huber_kernel(block_rows, lanes, rows, blocks_per_slice,
                                ragged, has_dead_steps)

    def in_map(s, k):
        # Clamp so an over-run step (only possible when has_dead_steps) re-reads
        # the last valid block; its contribution is skipped in-kernel.
        return (jnp.minimum(s * blocks_per_slice + k, total_blocks - 1), 0)

    block_in_bytes = block_rows * lanes * itemsize
    # 2 inputs x 2 buffers x block + output/partials + headroom (<= ~40 MiB,
    # fits v7x's 64 MiB physical VMEM per TensorCore).
    vmem_limit = int(max(32 * 1024 * 1024, 4 * block_in_bytes + (4 << 20)))

    partials = pl.pallas_call(
        kernel,
        out_shape=jax.ShapeDtypeStruct((n_slices, 3, 8, lanes), jnp.float32),
        grid_spec=pltpu.PrefetchScalarGridSpec(
            num_scalar_prefetch=0,
            grid=(n_slices, blocks_per_slice),
            in_specs=[
                # TODO(synk): optionally sweep pipeline_mode=pl.Buffered(3)
                # if an xprof trace shows exposed DMA gaps at step boundaries.
                pl.BlockSpec((block_rows, lanes), in_map),
                pl.BlockSpec((block_rows, lanes), in_map),
            ],
            out_specs=pl.BlockSpec((1, 3, 8, lanes),
                                   lambda s, k: (s, 0, 0, 0)),
        ),
        compiler_params=pltpu.CompilerParams(
            dimension_semantics=("parallel", "arbitrary"),
            vmem_limit_bytes=vmem_limit,
        ),
        cost_estimate=pl.CostEstimate(
            flops=6 * total,
            transcendentals=0,
            bytes_accessed=2 * padded_total * itemsize
            + n_slices * 3 * 8 * lanes * 4,
        ),
    )(p2, t2)

    # Tiny cross-slice / cross-sublane / cross-lane collapse in plain JAX
    # (n_slices * 3 * 8 * lanes elements), then the Huber glue.
    max_abs = jnp.max(partials[:, 0])
    sum_abs = jnp.sum(partials[:, 1])
    sum_sq = jnp.sum(partials[:, 2])

    n_elem = jnp.float32(total)  # true element count (padding excluded)
    t = 0.2 * max_abs
    # mean over dim 1 then dim 0 == overall mean (equal-length rows)
    l1 = sum_abs / n_elem
    # Guard t == 0 (pred == truth): the selected branch is l1 anyway, but a
    # 0/0 in the dead branch would otherwise poison gradients.
    t_safe = jnp.where(t > 0, t, jnp.float32(1.0))
    l2 = (sum_sq / n_elem + t * t) / t_safe / 2.0
    # matches torch: if l1 > t return l2 else l1 (incl. l1==0, t==0 -> l1)
    return jnp.where(l1 > t, l2, l1)


if __name__ == "__main__":
    key = jax.random.PRNGKey(0)
    k1, k2 = jax.random.split(key)
    shape = (2, 4, 16, 16)  # (N, C, H, W)
    pred = jax.random.normal(k1, shape, dtype=jnp.float32)
    truth = jax.random.normal(k2, shape, dtype=jnp.float32)

    out = loss_huber(pred, truth)
    jax.block_until_ready(out)

    # pure-JAX reference (same math as the PyTorch module)
    dp = pred.reshape(shape[0], -1) - truth.reshape(shape[0], -1)
    t_ref = 0.2 * jnp.max(jnp.abs(dp))
    l1_ref = jnp.mean(jnp.mean(jnp.abs(dp), axis=1), axis=0)
    l2_ref = jnp.mean(jnp.mean((dp ** 2 + t_ref ** 2) / t_ref / 2, axis=1), axis=0)
    ref = jnp.where(l1_ref > t_ref, l2_ref, l1_ref)
    assert jnp.allclose(out, ref, rtol=1e-5, atol=1e-6), (out, ref)

    print("KERNEL_OK")
</pallas_src>

<mosaic_0001>
module attributes {stable_mosaic.version = 11 : i64} {
  func.func @kernel(%arg0: i32, %arg1: i32, %arg2: memref<4x512xf32, #tpu.memory_space<vmem>>, %arg3: memref<4x512xf32, #tpu.memory_space<vmem>>, %arg4: memref<1x3x8x512xf32, #tpu.memory_space<vmem>>) attributes {dimension_semantics = [#tpu.dimension_semantics<parallel>, #tpu.dimension_semantics<arbitrary>], iteration_bounds = array<i64: 1, 1>, scalar_prefetch = 0 : i64, scratch_operands = 0 : i64, tpu.core_type = #tpu.core_type<tc>, window_params = [{transform_indices = @transform_0, window_bounds = array<i64: 4, 512>}, {transform_indices = @transform_1, window_bounds = array<i64: 4, 512>}, {transform_indices = @transform_2, window_bounds = array<i64: 1, 3, 8, 512>}]} {
    %c0_i32 = arith.constant 0 : i32
    %0 = arith.cmpi eq, %arg1, %c0_i32 : i32
    %1 = arith.extui %0 : i1 to i32
    %c0_i32_0 = arith.constant 0 : i32
    %2 = arith.cmpi ne, %1, %c0_i32_0 : i32
    scf.if %2 {
      %cst_28 = arith.constant 0.000000e+00 : f32
      %32 = vector.broadcast %cst_28 : f32 to vector<1x3x8x512xf32>
      %c0_29 = arith.constant 0 : index
      %c0_30 = arith.constant 0 : index
      %c0_31 = arith.constant 0 : index
      %c0_32 = arith.constant 0 : index
      %33 = vector.load %arg4[%c0_29, %c0_30, %c0_31, %c0_32] : memref<1x3x8x512xf32, #tpu.memory_space<vmem>>, vector<1x3x8x512xf32>
      tpu.vector_store %arg4[%c0_29, %c0_30, %c0_31, %c0_32], %32 {strides = array<i32>} : memref<1x3x8x512xf32, #tpu.memory_space<vmem>>, vector<1x3x8x512xf32>,
    } else {
    }
    %c0 = arith.constant 0 : index
    %c0_1 = arith.constant 0 : index
    %3 = vector.load %arg2[%c0, %c0_1] : memref<4x512xf32, #tpu.memory_space<vmem>>, vector<4x512xf32>
    %c0_2 = arith.constant 0 : index
    %c0_3 = arith.constant 0 : index
    %4 = vector.load %arg3[%c0_2, %c0_3] : memref<4x512xf32, #tpu.memory_space<vmem>>, vector<4x512xf32>
    %5 = arith.subf %3, %4 : vector<4x512xf32>
    %6 = math.absf %5 : vector<4x512xf32>
    %7 = arith.mulf %5, %5 : vector<4x512xf32>
    %cst = arith.constant dense<0xFF800000> : vector<512xf32>
    %8 = vector.multi_reduction <maximumf>, %6, %cst [0] : vector<4x512xf32> to vector<512xf32>
    %9 = vector.shape_cast %8 : vector<512xf32> to vector<1x512xf32>
    %cst_4 = arith.constant dense<0.000000e+00> : vector<512xf32>
    %10 = vector.multi_reduction <add>, %6, %cst_4 [0] : vector<4x512xf32> to vector<512xf32>
    %11 = vector.shape_cast %10 : vector<512xf32> to vector<1x512xf32>
    %cst_5 = arith.constant dense<0.000000e+00> : vector<512xf32>
    %12 = vector.multi_reduction <add>, %7, %cst_5 [0] : vector<4x512xf32> to vector<512xf32>
    %13 = vector.shape_cast %12 : vector<512xf32> to vector<1x512xf32>
    %c0_6 = arith.constant 0 : index
    %c0_7 = arith.constant 0 : index
    %c0_8 = arith.constant 0 : index
    %c0_9 = arith.constant 0 : index
    %14 = vector.load %arg4[%c0_6, %c0_7, %c0_8, %c0_9] : memref<1x3x8x512xf32, #tpu.memory_space<vmem>>, vector<1x1x1x512xf32>
    %15 = vector.shape_cast %14 : vector<1x1x1x512xf32> to vector<1x512xf32>
    %16 = arith.maximumf %15, %9 : vector<1x512xf32>
    %c0_10 = arith.constant 0 : index
    %c0_11 = arith.constant 0 : index
    %c0_12 = arith.constant 0 : index
    %c0_13 = arith.constant 0 : index
    %17 = vector.load %arg4[%c0_10, %c0_11, %c0_12, %c0_13] : memref<1x3x8x512xf32, #tpu.memory_space<vmem>>, vector<1x1x1x512xf32>
    %18 = vector.shape_cast %17 : vector<1x1x1x512xf32> to vector<1x512xf32>
    %19 = vector.shape_cast %16 : vector<1x512xf32> to vector<1x1x1x512xf32>
    tpu.vector_store %arg4[%c0_10, %c0_11, %c0_12, %c0_13], %19 {strides = array<i32>} : memref<1x3x8x512xf32, #tpu.memory_space<vmem>>, vector<1x1x1x512xf32>,
    %c0_14 = arith.constant 0 : index
    %c1 = arith.constant 1 : index
    %c0_15 = arith.constant 0 : index
    %c0_16 = arith.constant 0 : index
    %20 = vector.load %arg4[%c0_14, %c1, %c0_15, %c0_16] : memref<1x3x8x512xf32, #tpu.memory_space<vmem>>, vector<1x1x1x512xf32>
    %21 = vector.shape_cast %20 : vector<1x1x1x512xf32> to vector<1x512xf32>
    %22 = arith.addf %21, %11 : vector<1x512xf32>
    %c0_17 = arith.constant 0 : index
    %c1_18 = arith.constant 1 : index
    %c0_19 = arith.constant 0 : index
    %c0_20 = arith.constant 0 : index
    %23 = vector.load %arg4[%c0_17, %c1_18, %c0_19, %c0_20] : memref<1x3x8x512xf32, #tpu.memory_space<vmem>>, vector<1x1x1x512xf32>
    %24 = vector.shape_cast %23 : vector<1x1x1x512xf32> to vector<1x512xf32>
    %25 = vector.shape_cast %22 : vector<1x512xf32> to vector<1x1x1x512xf32>
    tpu.vector_store %arg4[%c0_17, %c1_18, %c0_19, %c0_20], %25 {strides = array<i32>} : memref<1x3x8x512xf32, #tpu.memory_space<vmem>>, vector<1x1x1x512xf32>,
    %c0_21 = arith.constant 0 : index
    %c2 = arith.constant 2 : index
    %c0_22 = arith.constant 0 : index
    %c0_23 = arith.constant 0 : index
    %26 = vector.load %arg4[%c0_21, %c2, %c0_22, %c0_23] : memref<1x3x8x512xf32, #tpu.memory_space<vmem>>, vector<1x1x1x512xf32>
    %27 = vector.shape_cast %26 : vector<1x1x1x512xf32> to vector<1x512xf32>
    %28 = arith.addf %27, %13 : vector<1x512xf32>
    %c0_24 = arith.constant 0 : index
    %c2_25 = arith.constant 2 : index
    %c0_26 = arith.constant 0 : index
    %c0_27 = arith.constant 0 : index
    %29 = vector.load %arg4[%c0_24, %c2_25, %c0_26, %c0_27] : memref<1x3x8x512xf32, #tpu.memory_space<vmem>>, vector<1x1x1x512xf32>
    %30 = vector.shape_cast %29 : vector<1x1x1x512xf32> to vector<1x512xf32>
    %31 = vector.shape_cast %28 : vector<1x512xf32> to vector<1x1x1x512xf32>
    tpu.vector_store %arg4[%c0_24, %c2_25, %c0_26, %c0_27], %31 {strides = array<i32>} : memref<1x3x8x512xf32, #tpu.memory_space<vmem>>, vector<1x1x1x512xf32>,
    return
  }
  func.func @transform_0(%arg0: i32, %arg1: i32) -> (i32, i32) {
    %c1_i32 = arith.constant 1 : i32
    %0 = arith.muli %arg0, %c1_i32 : i32
    %1 = arith.addi %0, %arg1 : i32
    %c0_i32 = arith.constant 0 : i32
    %2 = arith.minsi %1, %c0_i32 : i32
    %c0_i32_0 = arith.constant 0 : i32
    %c0_i32_1 = arith.constant 0 : i32
    return %2, %c0_i32_0 : i32, i32
  }
  func.func @transform_1(%arg0: i32, %arg1: i32) -> (i32, i32) {
    %c1_i32 = arith.constant 1 : i32
    %0 = arith.muli %arg0, %c1_i32 : i32
    %1 = arith.addi %0, %arg1 : i32
    %c0_i32 = arith.constant 0 : i32
    %2 = arith.minsi %1, %c0_i32 : i32
    %c0_i32_0 = arith.constant 0 : i32
    %c0_i32_1 = arith.constant 0 : i32
    return %2, %c0_i32_0 : i32, i32
  }
  func.func @transform_2(%arg0: i32, %arg1: i32) -> (i32, i32, i32, i32) {
    %c0_i32 = arith.constant 0 : i32
    %c0_i32_0 = arith.constant 0 : i32
    %c0_i32_1 = arith.constant 0 : i32
    %c0_i32_2 = arith.constant 0 : i32
    return %arg0, %c0_i32, %c0_i32_0, %c0_i32_1 : i32, i32, i32, i32
  }
}

</mosaic_0001>

<llo_original>
// kernel: tpu_custom_call.1
$region0: #{tpu_custom_call.1}
  #allocation0 [shape = 'u32[]', space=smem, size = 0x4, offset = 0x4, fixed_abs, tag = 'smem constant byte address 0x4 - core index']
  #allocation1 [shape = 'u32[144,128]{1,0:T(1,128)}', space=vmem, size = 0x12000, scoped, tag = 'internal scratch']
  %s0 = inlined_call_operand.hbm [shape: f32[4,512], index: 0, kind: input, shape index: {}]
  %s1 = inlined_call_operand.hbm [shape: f32[4,512], index: 1, kind: input, shape index: {}]
  %s2 = inlined_call_operand.hbm [shape: f32[1,3,8,512], index: 2, kind: output, shape index: {}]
  %s3 = sld [smem:[#allocation0]]
  $region30: #{tpu_custom_call.1} parent=0
    _
  %s5 = ssub.s32 1, %s3
  %s6 = scalar_select 0, %s5, %s3
  $region1: #{tpu_custom_call.1} parent=0
    #allocation2 [shape = 'u8[8192]{0}', space=vmem, size = 0x2000, scoped, tag = 'input window, operand 0, single buffered']
    #allocation3 [shape = 's32[1]{0}', space=sflag, size = 0x4, scoped, tag = 'scoped memory for tpu_custom_call.1']
    #allocation4 [shape = 's32[1]{0}', space=sflag, size = 0x4, scoped, tag = 'scoped memory for tpu_custom_call.1']
    #allocation5 [shape = 'u8[8192]{0}', space=vmem, size = 0x2000, scoped, tag = 'input window, operand 1, single buffered']
    #allocation6 [shape = 's32[1]{0}', space=sflag, size = 0x4, scoped, tag = 'scoped memory for tpu_custom_call.1']
    #allocation7 [shape = 'u8[49152]{0}', space=vmem, size = 0xc000, scoped, tag = 'output window, operand 0, single buffered']
    %7 = vsyncpa [#allocation3], 0
    %8 = vsyncpa [#allocation6], 0
    %9 = vsyncpa [#allocation4], 0
    // Predicated region
    $region2: #{tpu_custom_call.1} parent=1 // pred_check
      _
    $region3: #{tpu_custom_call.1} parent=1 // pred_check_branch
      %11 = sbr.rel (0) target = $region5
    $region4: #{tpu_custom_call.1} parent=1 // pred_region
      %s12 = sadd.s32 0, 0
      %p13 = scmp.lt.s32.totalorder %s12, 0
      %s14 = scalar_select %p13, %s12, 0
      %s16 = ssub.s32 256, 256
      %17 = vsyncadd [#allocation3], %s16
      %s18 = smul.addr %s14, 4
      %s19 = smul.addr %s18, 64
      %s20 = scalar_lea.hbm %s0, %s19
      %s22 = sshll.u32 [#allocation2], 4
      %s23 = int_to_ptr.vmem [resolvable:$true] %s22
      %25 = dma.hbm_to_vmem [thread:$0]  %s20, 256, %s23, [#allocation3]
    $region5: #{tpu_custom_call.1} parent=1 // pred_fallthru
      _
    // Predicated region
    $region6: #{tpu_custom_call.1} parent=1 // pred_check
      _
    $region7: #{tpu_custom_call.1} parent=1 // pred_check_branch
      %27 = sbr.rel (0) target = $region9
    $region8: #{tpu_custom_call.1} parent=1 // pred_region
      %s28 = sadd.s32 0, 0
      %p29 = scmp.lt.s32.totalorder %s28, 0
      %s30 = scalar_select %p29, %s28, 0
      %s32 = ssub.s32 256, 256
      %33 = vsyncadd [#allocation6], %s32
      %s34 = smul.addr %s30, 4
      %s35 = smul.addr %s34, 64
      %s36 = scalar_lea.hbm %s1, %s35
      %s38 = sshll.u32 [#allocation5], 4
      %s39 = int_to_ptr.vmem [resolvable:$true] %s38
      %41 = dma.hbm_to_vmem [thread:$0]  %s36, 256, %s39, [#allocation6]
    $region9: #{tpu_custom_call.1} parent=1 // pred_fallthru
      _
    // Predicated region
    $region10: #{tpu_custom_call.1} parent=1 // pred_check
      _
    $region11: #{tpu_custom_call.1} parent=1 // pred_check_branch
      %43 = sbr.rel (0) target = $region13
    $region12: #{tpu_custom_call.1} parent=1 // pred_region
      %44 = dma.done [#allocation3], 256
    $region13: #{tpu_custom_call.1} parent=1 // pred_fallthru
      _
    // Predicated region
    $region14: #{tpu_custom_call.1} parent=1 // pred_check
      _
    $region15: #{tpu_custom_call.1} parent=1 // pred_check_branch
      %46 = sbr.rel (0) target = $region17
    $region16: #{tpu_custom_call.1} parent=1 // pred_region
      %47 = dma.done [#allocation6], 256
    $region17: #{tpu_custom_call.1} parent=1 // pred_fallthru
      _
    %s48 = sadd.s32 0, 0
    %p49 = scmp.lt.s32.totalorder %s48, 0
    %s50 = scalar_select %p49, %s48, 0
    %s51 = sadd.s32 0, 0
    %p52 = scmp.lt.s32.totalorder %s51, 0
    %s53 = scalar_select %p52, %s51, 0
    %p54 = scmp.eq.s32.totalorder 0, 0
    // Predicated region
    $region18: #{tpu_custom_call.1} parent=1 // pred_check
      %p55 = pneg %p54
    $region19: #{tpu_custom_call.1} parent=1 // pred_check_branch
      %57 = sbr.rel (%p55) target = $region21
    $region20: #{tpu_custom_call.1} parent=1 // pred_region
      %58 = vst [vmem:[#allocation7] sm:$0xff] 0.0
      %59 = vst [vmem:[#allocation7 + $0x8] sm:$0xff] 0.0
      %60 = vst [vmem:[#allocation7 + $0x10] sm:$0xff] 0.0
      %61 = vst [vmem:[#allocation7 + $0x18] sm:$0xff] 0.0
      %62 = vst [vmem:[#allocation7 + $0x20] sm:$0xff] 0.0
      %63 = vst [vmem:[#allocation7 + $0x28] sm:$0xff] 0.0
      %64 = vst [vmem:[#allocation7 + $0x30] sm:$0xff] 0.0
      %65 = vst [vmem:[#allocation7 + $0x38] sm:$0xff] 0.0
      %66 = vst [vmem:[#allocation7 + $0x40] sm:$0xff] 0.0
      %67 = vst [vmem:[#allocation7 + $0x48] sm:$0xff] 0.0
      %68 = vst [vmem:[#allocation7 + $0x50] sm:$0xff] 0.0
      %69 = vst [vmem:[#allocation7 + $0x58] sm:$0xff] 0.0
    $region21: #{tpu_custom_call.1} parent=1 // pred_fallthru
      _
    %v70 = vld [vmem:[#allocation2] sm:$0xff]
    %v71 = vld [vmem:[#allocation2 + $0x8] sm:$0xff]
    %v72 = vld [vmem:[#allocation5] sm:$0xff]
    %v73 = vld [vmem:[#allocation5 + $0x8] sm:$0xff]
    %v74 = vsub.f32 %v70, %v72
    %v75 = vsub.f32 %v71, %v73
    %v76 = vand.u32 2147483647, %v74
    %v77 = vand.u32 2147483647, %v75
    %v78 = vmul.f32 %v74, %v74
    %v79 = vmul.f32 %v75, %v75
    %v82 = vcombine.high %v76, %v76
    %v83 = vcombine.high %v77, %v77
    %vm86 = vcmask 1043456
    %v87 = vsel %vm86, %v76, -inf
    %v88 = vrot.slane %v87, 4
    %v89 = vmax.f32 %v87, %v88
    %v90 = vrot.slane %v89, 2
    %v91 = vmax.f32 %v89, %v90
    %v92 = vrot.slane %v91, 1
    %v93 = vmax.f32 %v91, %v92
    %v94 = vsel %vm86, %v82, -inf
    %v95 = vrot.slane %v94, 4
    %v96 = vmax.f32 %v94, %v95
    %v97 = vrot.slane %v96, 2
    %v98 = vmax.f32 %v96, %v97
    %v99 = vrot.slane %v98, 1
    %v100 = vmax.f32 %v98, %v99
    %v101 = vsel %vm86, %v77, -inf
    %v102 = vrot.slane %v101, 4
    %v103 = vmax.f32 %v101, %v102
    %v104 = vrot.slane %v103, 2
    %v105 = vmax.f32 %v103, %v104
    %v106 = vrot.slane %v105, 1
    %v107 = vmax.f32 %v105, %v106
    %v108 = vsel %vm86, %v83, -inf
    %v109 = vrot.slane %v108, 4
    %v110 = vmax.f32 %v108, %v109
    %v111 = vrot.slane %v110, 2
    %v112 = vmax.f32 %v110, %v111
    %v113 = vrot.slane %v112, 1
    %v114 = vmax.f32 %v112, %v113
    %v115 = vsel %vm86, %v76, 0.0
    %v116 = vrot.slane %v115, 4
    %v117 = vadd.f32 %v115, %v116
    %v118 = vrot.slane %v117, 2
    %v119 = vadd.f32 %v117, %v118
    %v120 = vrot.slane %v119, 1
    %v121 = vadd.f32 %v119, %v120
    %v122 = vsel %vm86, %v82, 0.0
    %v123 = vrot.slane %v122, 4
    %v124 = vadd.f32 %v122, %v123
    %v125 = vrot.slane %v124, 2
    %v126 = vadd.f32 %v124, %v125
    %v127 = vrot.slane %v126, 1
    %v128 = vadd.f32 %v126, %v127
    %v129 = vsel %vm86, %v77, 0.0
    %v130 = vrot.slane %v129, 4
    %v131 = vadd.f32 %v129, %v130
    %v132 = vrot.slane %v131, 2
    %v133 = vadd.f32 %v131, %v132
    %v134 = vrot.slane %v133, 1
    %v135 = vadd.f32 %v133, %v134
    %v136 = vsel %vm86, %v83, 0.0
    %v137 = vrot.slane %v136, 4
    %v138 = vadd.f32 %v136, %v137
    %v139 = vrot.slane %v138, 2
    %v140 = vadd.f32 %v138, %v139
    %v141 = vrot.slane %v140, 1
    %v142 = vadd.f32 %v140, %v141
    %v145 = vcombine.high %v78, %v78
    %v146 = vcombine.high %v79, %v79
    %v149 = vsel %vm86, %v78, 0.0
    %v150 = vrot.slane %v149, 4
    %v151 = vadd.f32 %v149, %v150
    %v152 = vrot.slane %v151, 2
    %v153 = vadd.f32 %v151, %v152
    %v154 = vrot.slane %v153, 1
    %v155 = vadd.f32 %v153, %v154
    %v156 = vsel %vm86, %v145, 0.0
    %v157 = vrot.slane %v156, 4
    %v158 = vadd.f32 %v156, %v157
    %v159 = vrot.slane %v158, 2
    %v160 = vadd.f32 %v158, %v159
    %v161 = vrot.slane %v160, 1
    %v162 = vadd.f32 %v160, %v161
    %v163 = vsel %vm86, %v79, 0.0
    %v164 = vrot.slane %v163, 4
    %v165 = vadd.f32 %v163, %v164
    %v166 = vrot.slane %v165, 2
    %v167 = vadd.f32 %v165, %v166
    %v168 = vrot.slane %v167, 1
    %v169 = vadd.f32 %v167, %v168
    %v170 = vsel %vm86, %v146, 0.0
    %v171 = vrot.slane %v170, 4
    %v172 = vadd.f32 %v170, %v171
    %v173 = vrot.slane %v172, 2
    %v174 = vadd.f32 %v172, %v173
    %v175 = vrot.slane %v174, 1
    %v176 = vadd.f32 %v174, %v175
    %v177 = vld [vmem:[#allocation7] ss:$8 sm:$0xf]
    %v182 = vcombine.low %v93, %v100
    %v183 = vcombine.low %v107, %v114
    %v185 = vunpack.c.l.s4 1966171168
    %v186 = vunpack.c.0.s8 %v185
    %v187 = vlaneseq
    %v188 = vshrl.u32 %v187, 7
    %v189 = vsub.s32 %v186, %v188
    %v190 = vrot.slane %v182, %v189
    %v192 = vunpack.c.l.s4 1966171168
    %v193 = vunpack.c.0.s8 %v192
    %v194 = vlaneseq
    %v195 = vshrl.u32 %v194, 7
    %v196 = vsub.s32 %v193, %v195
    %v197 = vrot.slane %v183, %v196
    %v198 = vcombine.low %v190, %v197
    %v200 = vunpack.c.l.s4 1966171168
    %v201 = vunpack.c.0.s8 %v200
    %v202 = vlaneseq
    %v203 = vshrl.u32 %v202, 7
    %v204 = vsub.s32 %v201, %v203
    %v205 = vrot.slane %v198, %v204
    %v207 = vmax.f32 %v177, %v205
    %v208 = vlaneseq
    %vm209 = vcmp.ge.s32.totalorder %v208, 0
    %vm210 = vcmp.lt.s32.totalorder %v208, 512
    %vm211 = vmand %vm209, %vm210
    %212 = vst.msk [vmem:[#allocation7] ss:$8 sm:$0xf] %vm211, %v207
    %213 = vst.msk [vmem:[#allocation7] ss:$8 sm:$0x0] %vm211, %v207
    %s214 = scalar_lea.vmem [#allocation7], 32
    %v215 = vld [vmem:[%s214] ss:$8 sm:$0xf]
    %v220 = vcombine.low %v121, %v128
    %v221 = vcombine.low %v135, %v142
    %v223 = vunpack.c.l.s4 1966171168
    %v224 = vunpack.c.0.s8 %v223
    %v225 = vlaneseq
    %v226 = vshrl.u32 %v225, 7
    %v227 = vsub.s32 %v224, %v226
    %v228 = vrot.slane %v220, %v227
    %v230 = vunpack.c.l.s4 1966171168
    %v231 = vunpack.c.0.s8 %v230
    %v232 = vlaneseq
    %v233 = vshrl.u32 %v232, 7
    %v234 = vsub.s32 %v231, %v233
    %v235 = vrot.slane %v221, %v234
    %v236 = vcombine.low %v228, %v235
    %v238 = vunpack.c.l.s4 1966171168
    %v239 = vunpack.c.0.s8 %v238
    %v240 = vlaneseq
    %v241 = vshrl.u32 %v240, 7
    %v242 = vsub.s32 %v239, %v241
    %v243 = vrot.slane %v236, %v242
    %v245 = vadd.f32 %v215, %v243
    %246 = vst.msk [vmem:[%s214] ss:$8 sm:$0xf] %vm211, %v245
    %247 = vst.msk [vmem:[%s214] ss:$8 sm:$0x0] %vm211, %v245
    %s248 = scalar_lea.vmem [#allocation7], 64
    %v249 = vld [vmem:[%s248] ss:$8 sm:$0xf]
    %v254 = vcombine.low %v155, %v162
    %v255 = vcombine.low %v169, %v176
    %v257 = vunpack.c.l.s4 1966171168
    %v258 = vunpack.c.0.s8 %v257
    %v259 = vlaneseq
    %v260 = vshrl.u32 %v259, 7
    %v261 = vsub.s32 %v258, %v260
    %v262 = vrot.slane %v254, %v261
    %v264 = vunpack.c.l.s4 1966171168
    %v265 = vunpack.c.0.s8 %v264
    %v266 = vlaneseq
    %v267 = vshrl.u32 %v266, 7
    %v268 = vsub.s32 %v265, %v267
    %v269 = vrot.slane %v255, %v268
    %v270 = vcombine.low %v262, %v269
    %v272 = vunpack.c.l.s4 1966171168
    %v273 = vunpack.c.0.s8 %v272
    %v274 = vlaneseq
    %v275 = vshrl.u32 %v274, 7
    %v276 = vsub.s32 %v273, %v275
    %v277 = vrot.slane %v270, %v276
    %v279 = vadd.f32 %v249, %v277
    %280 = vst.msk [vmem:[%s248] ss:$8 sm:$0xf] %vm211, %v279
    %281 = vst.msk [vmem:[%s248] ss:$8 sm:$0x0] %vm211, %v279
    // Predicated region
    $region22: #{tpu_custom_call.1} parent=1 // pred_check
      _
    $region23: #{tpu_custom_call.1} parent=1 // pred_check_branch
      %283 = sbr.rel (0) target = $region25
    $region24: #{tpu_custom_call.1} parent=1 // pred_region
      %s285 = ssub.s32 1536, 1536
      %286 = vsyncadd [#allocation4], %s285
      %s287 = sshll.u32 [#allocation7], 4
      %s288 = int_to_ptr.vmem [resolvable:$true] %s287
      %293 = dma.vmem_to_hbm [thread:$0]  %s288, 1536, %s2, [#allocation4], 512, 512, 32
    $region25: #{tpu_custom_call.1} parent=1 // pred_fallthru
      _
    // Predicated region
    $region26: #{tpu_custom_call.1} parent=1 // pred_check
      _
    $region27: #{tpu_custom_call.1} parent=1 // pred_check_branch
      %295 = sbr.rel (0) target = $region29
    $region28: #{tpu_custom_call.1} parent=1 // pred_region
      %296 = dma.done [#allocation4], 1536
    $region29: #{tpu_custom_call.1} parent=1 // pred_fallthru
      _
    %297 = vsyncpa [#allocation3], 1
    %298 = vsyncpa [#allocation6], 1
    %299 = vsyncpa [#allocation4], 1

</llo_original>
